<compile_context>
chip_gen: v7x
topology: tpu7x:2x2x1
jax: 0.10.0
libtpu: 0.0.40
codegen_flags: <defaults>
</compile_context>

<pallas_src>
import functools

import numpy as np
import jax
import jax.numpy as jnp
from jax.experimental import pallas as pl
from jax.experimental.pallas import tpu as pltpu

BN_EPS = 1e-5
LANE = 128


def _round_up(n, m=LANE):
    return ((n + m - 1) // m) * m


# ---------------------------------------------------------------------------
# Fused kernel factory: all residual blocks + tiled final Linear.
# ---------------------------------------------------------------------------
def _make_generator_kernel(num_layers, d0_pad, o_pads, n_true, mat_dtype):
    inv_n = 1.0 / float(n_true)

    def kernel(*refs):
        x_ref = refs[0]                        # (n_pad, d0_pad)         mat_dtype
        mask_ref = refs[1]                     # (n_pad, 1)              f32
        res_w_refs = refs[2:2 + num_layers]    # (cum_in_pad, o_pad)     mat_dtype
        gb_ref = refs[2 + num_layers]          # (2*L, max_o_pad)        f32
        wf_ref = refs[3 + num_layers]          # (total_in_pad, tn)      mat_dtype
        bf_ref = refs[4 + num_layers]          # (1, tn)                 f32
        out_ref = refs[5 + num_layers]         # (n_pad, tn)             f32
        act_ref = refs[6 + num_layers]         # VMEM (n_pad, total_in_pad)

        # The residual stack depends only on the input (not on the output
        # tile), so compute it once at grid step 0 into the persistent
        # scratch and reuse it for every output tile of the final Linear.
        # TODO(synk): on v7x (2 TCs) one could instead recompute the cheap
        # stack per tile and mark the grid axis "parallel" to use both cores.
        @pl.when(pl.program_id(0) == 0)
        def _build_stack():
            act_ref[:, :d0_pad] = x_ref[...]
            rmask = mask_ref[...]              # zeros on batch-padding rows
            cum = d0_pad
            for k in range(num_layers):
                o_pad = o_pads[k]
                # Linear (bias omitted: batch-stat BN cancels it exactly).
                h = jnp.dot(act_ref[:, :cum], res_w_refs[k][...],
                            preferred_element_type=jnp.float32)
                # One-pass BatchNorm1d training statistics (biased variance).
                # Pad rows of h are exactly zero, so the sums are clean;
                # divide by the true batch size.
                s1 = jnp.sum(h, axis=0, keepdims=True)
                s2 = jnp.sum(h * h, axis=0, keepdims=True)
                mean = s1 * inv_n
                var = jnp.maximum(s2 * inv_n - mean * mean, 0.0)
                gamma = gb_ref[2 * k:2 * k + 1, :o_pad]
                beta = gb_ref[2 * k + 1:2 * k + 2, :o_pad]
                scale = gamma * jax.lax.rsqrt(var + BN_EPS)
                shift = beta - scale * mean
                y = jnp.maximum(h * scale + shift, 0.0)   # BN affine + ReLU
                y = y * rmask                             # keep pad rows zero
                act_ref[:, cum:cum + o_pad] = y.astype(mat_dtype)
                cum += o_pad

        # Final Linear for this output-feature tile; the weight tile is
        # streamed / double-buffered by the BlockSpec pipeline.
        out_ref[...] = (
            jnp.dot(act_ref[...], wf_ref[...], preferred_element_type=jnp.float32)
            + bf_ref[...]
        )

    return kernel


# ---------------------------------------------------------------------------
# Host-side (one-time) parameter packing: transpose + pad + segment scatter.
# ---------------------------------------------------------------------------
def _pack_weight(w_torch, embedding_dim, prev_out_dims, dtype):
    """Pack a PyTorch-layout (out, in) weight into a lane-dense (in_pad, o_pad)
    matrix whose 128-padded row blocks follow the kernel's scratch segment
    order [input, y_0, ..., y_{L-1}] (torch concat order is newest-first)."""
    w = np.asarray(w_torch, np.float32)
    o, in_dim = w.shape
    prev = list(prev_out_dims)
    assert in_dim == embedding_dim + sum(prev)
    # (width, torch-column offset) per scratch-order segment.
    segs = [(embedding_dim, sum(prev))]
    for k in range(len(prev)):
        segs.append((prev[k], sum(prev[k + 1:])))
    o_pad = _round_up(o)
    in_pad = sum(_round_up(width) for width, _ in segs)
    packed = np.zeros((in_pad, o_pad), np.float32)
    row = 0
    for width, col in segs:
        packed[row:row + width, :o] = w[:, col:col + width].T
        row += _round_up(width)
    return jnp.asarray(packed, dtype)


def pack_generator_params(params, embedding_dim, generator_dim, data_dim,
                          matmul_dtype=jnp.bfloat16):
    """Pre-transpose / pad / permute all weights into the fused-kernel layout.
    Matmul operands are stored in `matmul_dtype`; BN params / bias stay f32."""
    generator_dim = tuple(generator_dim)
    num_layers = len(generator_dim)
    res_ws = [
        _pack_weight(p["w"], embedding_dim, generator_dim[:i], matmul_dtype)
        for i, p in enumerate(params["residuals"])
    ]
    max_o_pad = max(_round_up(o) for o in generator_dim)
    gb = np.zeros((2 * num_layers, max_o_pad), np.float32)
    for i, p in enumerate(params["residuals"]):
        o = generator_dim[i]
        gb[2 * i, :o] = np.asarray(p["gamma"], np.float32)[0]
        gb[2 * i + 1, :o] = np.asarray(p["beta"], np.float32)[0]
    wf = _pack_weight(params["final"]["w"], embedding_dim, generator_dim,
                      matmul_dtype)
    d_pad = _round_up(data_dim)
    bf = np.zeros((1, d_pad), np.float32)
    bf[0, :data_dim] = np.asarray(params["final"]["b"], np.float32)[0]
    return {"res_w": res_ws, "gb": jnp.asarray(gb),
            "final_w": wf, "final_b": jnp.asarray(bf)}


# ---------------------------------------------------------------------------
# Forward
# ---------------------------------------------------------------------------
@functools.partial(jax.jit, static_argnames=("embedding_dim", "generator_dim",
                                             "data_dim", "tn"))
def generator_forward(packed, x, *, embedding_dim, generator_dim, data_dim,
                      tn=None):
    generator_dim = tuple(generator_dim)
    num_layers = len(generator_dim)
    mat_dtype = packed["final_w"].dtype
    mat_isz = np.dtype(mat_dtype).itemsize

    n, d0 = x.shape
    assert d0 == embedding_dim
    d0_pad = _round_up(embedding_dim)
    o_pads = tuple(_round_up(o) for o in generator_dim)
    total_in_pad, d_pad = packed["final_w"].shape
    assert total_in_pad == d0_pad + sum(o_pads)
    assert d_pad == _round_up(data_dim)

    # Output-feature tile width for the final Linear (multiple of 128;
    # 256 is a good default on v6e/v7x, 128 matches v5e's MXU).
    if tn is None:
        tn = 256 if (d_pad % 256 == 0 and d_pad >= 256) else 128
    assert d_pad % tn == 0

    # Pad batch rows to a bf16-friendly sublane multiple; pad rows are masked
    # out of the BN statistics and sliced off at the end.
    n_pad = max(_round_up(n, 16), 16)
    x_pad = jnp.zeros((n_pad, d0_pad), mat_dtype).at[:n, :d0].set(
        x.astype(mat_dtype))
    rowmask = jnp.zeros((n_pad, 1), jnp.float32).at[:n, :].set(1.0)

    args = [x_pad, rowmask, *packed["res_w"], packed["gb"],
            packed["final_w"], packed["final_b"]]

    def full(a):
        return pl.BlockSpec(a.shape, lambda j: (0, 0))

    in_specs = (
        [full(x_pad), full(rowmask)]
        + [full(w) for w in packed["res_w"]]
        + [full(packed["gb"]),
           pl.BlockSpec((total_in_pad, tn), lambda j: (0, j)),  # streamed W
           pl.BlockSpec((1, tn), lambda j: (0, j))]             # streamed bias
    )
    out_specs = pl.BlockSpec((n_pad, tn), lambda j: (0, j))

    # VMEM budget: double-buffered inputs/outputs + activation scratch,
    # clamped to stay inside v7x's 64 MiB physical VMEM.
    fixed_b = sum(int(np.prod(a.shape)) * np.dtype(a.dtype).itemsize
                  for a in args[:-2])
    stream_b = total_in_pad * tn * mat_isz + tn * 4 + n_pad * tn * 4
    scratch_b = n_pad * total_in_pad * mat_isz
    est = 2 * (fixed_b + stream_b) + scratch_b
    vmem_limit = int(min(max(2 * est, 32 << 20), 64 << 20))

    kernel = _make_generator_kernel(num_layers, d0_pad, o_pads, n, mat_dtype)
    out_pad = pl.pallas_call(
        kernel,
        out_shape=jax.ShapeDtypeStruct((n_pad, d_pad), jnp.float32),
        grid=(d_pad // tn,),
        in_specs=in_specs,
        out_specs=out_specs,
        scratch_shapes=[pltpu.VMEM((n_pad, total_in_pad), mat_dtype)],
        compiler_params=pltpu.CompilerParams(
            # Scratch is written at step 0 and reused -> sequential axis.
            dimension_semantics=("arbitrary",),
            vmem_limit_bytes=vmem_limit,
        ),
    )(*args)
    return out_pad[:n, :data_dim]


# ---------------------------------------------------------------------------
# Parameter init (PyTorch-style layouts) + pure-JAX f32 reference
# ---------------------------------------------------------------------------
def init_generator_params(key, embedding_dim, generator_dim, data_dim):
    params = {"residuals": []}
    dim = embedding_dim
    for item in generator_dim:
        key, kw, kb, kg, kbe = jax.random.split(key, 5)
        bound = 1.0 / float(np.sqrt(dim))
        params["residuals"].append({
            "w": jax.random.uniform(kw, (item, dim), jnp.float32, -bound, bound),
            "b": jax.random.uniform(kb, (1, item), jnp.float32, -bound, bound),
            # PyTorch BN init is gamma=1 / beta=0; randomize mildly so the
            # affine path is actually exercised by the check.
            "gamma": jax.random.uniform(kg, (1, item), jnp.float32, 0.5, 1.5),
            "beta": jax.random.uniform(kbe, (1, item), jnp.float32, -0.5, 0.5),
        })
        dim += item
    key, kw, kb = jax.random.split(key, 3)
    bound = 1.0 / float(np.sqrt(dim))
    params["final"] = {
        "w": jax.random.uniform(kw, (data_dim, dim), jnp.float32, -bound, bound),
        "b": jax.random.uniform(kb, (1, data_dim), jnp.float32, -bound, bound),
    }
    return params


def generator_ref(params, x):
    """Pure-JAX reference matching the PyTorch module (training-mode BN)."""
    for p in params["residuals"]:
        h = x @ p["w"].T + p["b"]
        mean = jnp.mean(h, axis=0, keepdims=True)
        var = jnp.mean((h - mean) ** 2, axis=0, keepdims=True)
        h = (h - mean) / jnp.sqrt(var + BN_EPS)
        h = p["gamma"] * h + p["beta"]
        h = jnp.maximum(h, 0.0)
        x = jnp.concatenate([h, x], axis=1)
    return x @ params["final"]["w"].T + params["final"]["b"]


if __name__ == "__main__":
    embedding_dim = 32
    generator_dim = (32, 32)
    data_dim = 200      # -> padded to 256, two 128-wide output tiles
    batch = 8           # -> padded to 16 rows; BN uses the true batch size

    key = jax.random.PRNGKey(0)
    key, kx = jax.random.split(key)
    x = jax.random.normal(kx, (batch, embedding_dim), jnp.float32)
    params = init_generator_params(key, embedding_dim, generator_dim, data_dim)
    ref = generator_ref(params, x)

    # Exact-math check: f32 matmul operands (validates layout, BN fusion,
    # batch-row masking, output tiling) against the reference at 1e-4.
    packed_f32 = pack_generator_params(params, embedding_dim, generator_dim,
                                       data_dim, matmul_dtype=jnp.float32)
    out_f32 = generator_forward(packed_f32, x, embedding_dim=embedding_dim,
                                generator_dim=generator_dim, data_dim=data_dim,
                                tn=128)
    out_f32 = jax.block_until_ready(out_f32)
    assert out_f32.shape == (batch, data_dim), out_f32.shape
    err_f32 = float(jnp.max(jnp.abs(out_f32 - ref)))
    assert err_f32 < 1e-4, err_f32

    # Production path: bf16 matmul operands, f32 accumulation / BN math.
    packed_bf16 = pack_generator_params(params, embedding_dim, generator_dim,
                                        data_dim, matmul_dtype=jnp.bfloat16)
    out_bf16 = generator_forward(packed_bf16, x, embedding_dim=embedding_dim,
                                 generator_dim=generator_dim, data_dim=data_dim,
                                 tn=128)
    out_bf16 = jax.block_until_ready(out_bf16)
    err_bf16 = float(jnp.max(jnp.abs(out_bf16 - ref)))
    assert err_bf16 < 1.5e-1, err_bf16   # bf16 operand rounding only

    print("KERNEL_OK")
</pallas_src>

<mosaic_0001>
module attributes {stable_mosaic.version = 11 : i64} {
  func.func @kernel(%arg0: i32, %arg1: memref<16x128xf32, #tpu.memory_space<vmem>>, %arg2: memref<16x1xf32, #tpu.memory_space<vmem>>, %arg3: memref<128x128xf32, #tpu.memory_space<vmem>>, %arg4: memref<256x128xf32, #tpu.memory_space<vmem>>, %arg5: memref<4x128xf32, #tpu.memory_space<vmem>>, %arg6: memref<384x128xf32, #tpu.memory_space<vmem>>, %arg7: memref<1x128xf32, #tpu.memory_space<vmem>>, %arg8: memref<16x128xf32, #tpu.memory_space<vmem>>, %arg9: memref<16x384xf32, #tpu.memory_space<vmem>>) attributes {dimension_semantics = [#tpu.dimension_semantics<arbitrary>], iteration_bounds = array<i64: 2>, scalar_prefetch = 0 : i64, scratch_operands = 1 : i64, tpu.core_type = #tpu.core_type<tc>, window_params = [{pipeline_mode = #tpu.pipeline_mode<synchronous>, transform_indices = @transform_0, window_bounds = array<i64: 16, 128>}, {pipeline_mode = #tpu.pipeline_mode<synchronous>, transform_indices = @transform_1, window_bounds = array<i64: 16, 1>}, {pipeline_mode = #tpu.pipeline_mode<synchronous>, transform_indices = @transform_2, window_bounds = array<i64: 128, 128>}, {pipeline_mode = #tpu.pipeline_mode<synchronous>, transform_indices = @transform_3, window_bounds = array<i64: 256, 128>}, {pipeline_mode = #tpu.pipeline_mode<synchronous>, transform_indices = @transform_4, window_bounds = array<i64: 4, 128>}, {transform_indices = @transform_5, window_bounds = array<i64: 384, 128>}, {transform_indices = @transform_6, window_bounds = array<i64: 1, 128>}, {transform_indices = @transform_7, window_bounds = array<i64: 16, 128>}]} {
    %c0_i32 = arith.constant 0 : i32
    %0 = arith.cmpi eq, %arg0, %c0_i32 : i32
    %1 = arith.extui %0 : i1 to i32
    %c0_i32_0 = arith.constant 0 : i32
    %2 = arith.cmpi ne, %1, %c0_i32_0 : i32
    scf.if %2 {
      %c0_8 = arith.constant 0 : index
      %c0_9 = arith.constant 0 : index
      %10 = vector.load %arg1[%c0_8, %c0_9] : memref<16x128xf32, #tpu.memory_space<vmem>>, vector<16x128xf32>
      %c0_10 = arith.constant 0 : index
      %c0_11 = arith.constant 0 : index
      %11 = vector.load %arg9[%c0_10, %c0_11] : memref<16x384xf32, #tpu.memory_space<vmem>>, vector<16x128xf32>
      tpu.vector_store %arg9[%c0_10, %c0_11], %10 {strides = array<i32>} : memref<16x384xf32, #tpu.memory_space<vmem>>, vector<16x128xf32>,
      %c0_12 = arith.constant 0 : index
      %c0_13 = arith.constant 0 : index
      %12 = vector.load %arg2[%c0_12, %c0_13] : memref<16x1xf32, #tpu.memory_space<vmem>>, vector<16x1xf32>
      %c0_14 = arith.constant 0 : index
      %c0_15 = arith.constant 0 : index
      %13 = vector.load %arg9[%c0_14, %c0_15] : memref<16x384xf32, #tpu.memory_space<vmem>>, vector<16x128xf32>
      %c0_16 = arith.constant 0 : index
      %c0_17 = arith.constant 0 : index
      %14 = vector.load %arg3[%c0_16, %c0_17] : memref<128x128xf32, #tpu.memory_space<vmem>>, vector<128x128xf32>
      %cst_18 = arith.constant dense<0.000000e+00> : vector<16x128xf32>
      %15 = tpu.matmul %13, %14, %cst_18 {dimension_numbers = #tpu.dot_dimension_numbers<[1], [0], [0], [1], [0, 0, 1, 1], [], []>} : vector<16x128xf32>, vector<128x128xf32>, vector<16x128xf32> -> vector<16x128xf32>
      %cst_19 = arith.constant dense<0.000000e+00> : vector<128xf32>
      %16 = vector.multi_reduction <add>, %15, %cst_19 [0] : vector<16x128xf32> to vector<128xf32>
      %17 = vector.shape_cast %16 : vector<128xf32> to vector<1x128xf32>
      %18 = arith.mulf %15, %15 : vector<16x128xf32>
      %cst_20 = arith.constant dense<0.000000e+00> : vector<128xf32>
      %19 = vector.multi_reduction <add>, %18, %cst_20 [0] : vector<16x128xf32> to vector<128xf32>
      %20 = vector.shape_cast %19 : vector<128xf32> to vector<1x128xf32>
      %cst_21 = arith.constant 1.250000e-01 : f32
      %21 = vector.broadcast %cst_21 : f32 to vector<1x128xf32>
      %22 = arith.mulf %17, %21 : vector<1x128xf32>
      %cst_22 = arith.constant 1.250000e-01 : f32
      %23 = vector.broadcast %cst_22 : f32 to vector<1x128xf32>
      %24 = arith.mulf %20, %23 : vector<1x128xf32>
      %25 = arith.mulf %22, %22 : vector<1x128xf32>
      %26 = arith.subf %24, %25 : vector<1x128xf32>
      %cst_23 = arith.constant 0.000000e+00 : f32
      %27 = vector.broadcast %cst_23 : f32 to vector<1x128xf32>
      %28 = arith.maximumf %26, %27 : vector<1x128xf32>
      %c0_24 = arith.constant 0 : index
      %c0_25 = arith.constant 0 : index
      %29 = vector.load %arg5[%c0_24, %c0_25] : memref<4x128xf32, #tpu.memory_space<vmem>>, vector<1x128xf32>
      %c1 = arith.constant 1 : index
      %c0_26 = arith.constant 0 : index
      %30 = vector.load %arg5[%c1, %c0_26] : memref<4x128xf32, #tpu.memory_space<vmem>>, vector<1x128xf32>
      %cst_27 = arith.constant 9.99999974E-6 : f32
      %31 = vector.broadcast %cst_27 : f32 to vector<1x128xf32>
      %32 = arith.addf %28, %31 : vector<1x128xf32>
      %33 = math.rsqrt %32 : vector<1x128xf32>
      %34 = arith.mulf %29, %33 : vector<1x128xf32>
      %35 = arith.mulf %34, %22 : vector<1x128xf32>
      %36 = arith.subf %30, %35 : vector<1x128xf32>
      %37 = vector.broadcast %34 : vector<1x128xf32> to vector<16x128xf32>
      %38 = arith.mulf %15, %37 : vector<16x128xf32>
      %39 = vector.broadcast %36 : vector<1x128xf32> to vector<16x128xf32>
      %40 = arith.addf %38, %39 : vector<16x128xf32>
      %cst_28 = arith.constant 0.000000e+00 : f32
      %41 = vector.broadcast %cst_28 : f32 to vector<16x128xf32>
      %42 = arith.maximumf %40, %41 : vector<16x128xf32>
      %43 = vector.broadcast %12 : vector<16x1xf32> to vector<16x128xf32>
      %44 = arith.mulf %42, %43 : vector<16x128xf32>
      %c0_29 = arith.constant 0 : index
      %c128 = arith.constant 128 : index
      %45 = vector.load %arg9[%c0_29, %c128] : memref<16x384xf32, #tpu.memory_space<vmem>>, vector<16x128xf32>
      tpu.vector_store %arg9[%c0_29, %c128], %44 {strides = array<i32>} : memref<16x384xf32, #tpu.memory_space<vmem>>, vector<16x128xf32>,
      %c0_30 = arith.constant 0 : index
      %c0_31 = arith.constant 0 : index
      %46 = vector.load %arg9[%c0_30, %c0_31] : memref<16x384xf32, #tpu.memory_space<vmem>>, vector<16x256xf32>
      %c0_32 = arith.constant 0 : index
      %c0_33 = arith.constant 0 : index
      %47 = vector.load %arg4[%c0_32, %c0_33] : memref<256x128xf32, #tpu.memory_space<vmem>>, vector<256x128xf32>
      %cst_34 = arith.constant dense<0.000000e+00> : vector<16x128xf32>
      %48 = tpu.matmul %46, %47, %cst_34 {dimension_numbers = #tpu.dot_dimension_numbers<[1], [0], [0], [1], [0, 0, 1, 1], [], []>} : vector<16x256xf32>, vector<256x128xf32>, vector<16x128xf32> -> vector<16x128xf32>
      %cst_35 = arith.constant dense<0.000000e+00> : vector<128xf32>
      %49 = vector.multi_reduction <add>, %48, %cst_35 [0] : vector<16x128xf32> to vector<128xf32>
      %50 = vector.shape_cast %49 : vector<128xf32> to vector<1x128xf32>
      %51 = arith.mulf %48, %48 : vector<16x128xf32>
      %cst_36 = arith.constant dense<0.000000e+00> : vector<128xf32>
      %52 = vector.multi_reduction <add>, %51, %cst_36 [0] : vector<16x128xf32> to vector<128xf32>
      %53 = vector.shape_cast %52 : vector<128xf32> to vector<1x128xf32>
      %cst_37 = arith.constant 1.250000e-01 : f32
      %54 = vector.broadcast %cst_37 : f32 to vector<1x128xf32>
      %55 = arith.mulf %50, %54 : vector<1x128xf32>
      %cst_38 = arith.constant 1.250000e-01 : f32
      %56 = vector.broadcast %cst_38 : f32 to vector<1x128xf32>
      %57 = arith.mulf %53, %56 : vector<1x128xf32>
      %58 = arith.mulf %55, %55 : vector<1x128xf32>
      %59 = arith.subf %57, %58 : vector<1x128xf32>
      %cst_39 = arith.constant 0.000000e+00 : f32
      %60 = vector.broadcast %cst_39 : f32 to vector<1x128xf32>
      %61 = arith.maximumf %59, %60 : vector<1x128xf32>
      %c2 = arith.constant 2 : index
      %c0_40 = arith.constant 0 : index
      %62 = vector.load %arg5[%c2, %c0_40] : memref<4x128xf32, #tpu.memory_space<vmem>>, vector<1x128xf32>
      %c3 = arith.constant 3 : index
      %c0_41 = arith.constant 0 : index
      %63 = vector.load %arg5[%c3, %c0_41] : memref<4x128xf32, #tpu.memory_space<vmem>>, vector<1x128xf32>
      %cst_42 = arith.constant 9.99999974E-6 : f32
      %64 = vector.broadcast %cst_42 : f32 to vector<1x128xf32>
      %65 = arith.addf %61, %64 : vector<1x128xf32>
      %66 = math.rsqrt %65 : vector<1x128xf32>
      %67 = arith.mulf %62, %66 : vector<1x128xf32>
      %68 = arith.mulf %67, %55 : vector<1x128xf32>
      %69 = arith.subf %63, %68 : vector<1x128xf32>
      %70 = vector.broadcast %67 : vector<1x128xf32> to vector<16x128xf32>
      %71 = arith.mulf %48, %70 : vector<16x128xf32>
      %72 = vector.broadcast %69 : vector<1x128xf32> to vector<16x128xf32>
      %73 = arith.addf %71, %72 : vector<16x128xf32>
      %cst_43 = arith.constant 0.000000e+00 : f32
      %74 = vector.broadcast %cst_43 : f32 to vector<16x128xf32>
      %75 = arith.maximumf %73, %74 : vector<16x128xf32>
      %76 = vector.broadcast %12 : vector<16x1xf32> to vector<16x128xf32>
      %77 = arith.mulf %75, %76 : vector<16x128xf32>
      %c0_44 = arith.constant 0 : index
      %c256 = arith.constant 256 : index
      %78 = vector.load %arg9[%c0_44, %c256] : memref<16x384xf32, #tpu.memory_space<vmem>>, vector<16x128xf32>
      tpu.vector_store %arg9[%c0_44, %c256], %77 {strides = array<i32>} : memref<16x384xf32, #tpu.memory_space<vmem>>, vector<16x128xf32>,
    } else {
    }
    %c0 = arith.constant 0 : index
    %c0_1 = arith.constant 0 : index
    %3 = vector.load %arg9[%c0, %c0_1] : memref<16x384xf32, #tpu.memory_space<vmem>>, vector<16x384xf32>
    %c0_2 = arith.constant 0 : index
    %c0_3 = arith.constant 0 : index
    %4 = vector.load %arg6[%c0_2, %c0_3] : memref<384x128xf32, #tpu.memory_space<vmem>>, vector<384x128xf32>
    %cst = arith.constant dense<0.000000e+00> : vector<16x128xf32>
    %5 = tpu.matmul %3, %4, %cst {dimension_numbers = #tpu.dot_dimension_numbers<[1], [0], [0], [1], [0, 0, 1, 1], [], []>} : vector<16x384xf32>, vector<384x128xf32>, vector<16x128xf32> -> vector<16x128xf32>
    %c0_4 = arith.constant 0 : index
    %c0_5 = arith.constant 0 : index
    %6 = vector.load %arg7[%c0_4, %c0_5] : memref<1x128xf32, #tpu.memory_space<vmem>>, vector<1x128xf32>
    %7 = vector.broadcast %6 : vector<1x128xf32> to vector<16x128xf32>
    %8 = arith.addf %5, %7 : vector<16x128xf32>
    %c0_6 = arith.constant 0 : index
    %c0_7 = arith.constant 0 : index
    %9 = vector.load %arg8[%c0_6, %c0_7] : memref<16x128xf32, #tpu.memory_space<vmem>>, vector<16x128xf32>
    tpu.vector_store %arg8[%c0_6, %c0_7], %8 {strides = array<i32>} : memref<16x128xf32, #tpu.memory_space<vmem>>, vector<16x128xf32>,
    return
  }
  func.func @transform_0(%arg0: i32) -> (i32, i32) {
    %c0_i32 = arith.constant 0 : i32
    %c0_i32_0 = arith.constant 0 : i32
    %c0_i32_1 = arith.constant 0 : i32
    return %c0_i32, %c0_i32_0 : i32, i32
  }
  func.func @transform_1(%arg0: i32) -> (i32, i32) {
    %c0_i32 = arith.constant 0 : i32
    %c0_i32_0 = arith.constant 0 : i32
    %c0_i32_1 = arith.constant 0 : i32
    return %c0_i32, %c0_i32_0 : i32, i32
  }
  func.func @transform_2(%arg0: i32) -> (i32, i32) {
    %c0_i32 = arith.constant 0 : i32
    %c0_i32_0 = arith.constant 0 : i32
    %c0_i32_1 = arith.constant 0 : i32
    return %c0_i32, %c0_i32_0 : i32, i32
  }
  func.func @transform_3(%arg0: i32) -> (i32, i32) {
    %c0_i32 = arith.constant 0 : i32
    %c0_i32_0 = arith.constant 0 : i32
    %c0_i32_1 = arith.constant 0 : i32
    return %c0_i32, %c0_i32_0 : i32, i32
  }
  func.func @transform_4(%arg0: i32) -> (i32, i32) {
    %c0_i32 = arith.constant 0 : i32
    %c0_i32_0 = arith.constant 0 : i32
    %c0_i32_1 = arith.constant 0 : i32
    return %c0_i32, %c0_i32_0 : i32, i32
  }
  func.func @transform_5(%arg0: i32) -> (i32, i32) {
    %c0_i32 = arith.constant 0 : i32
    %c0_i32_0 = arith.constant 0 : i32
    return %c0_i32, %arg0 : i32, i32
  }
  func.func @transform_6(%arg0: i32) -> (i32, i32) {
    %c0_i32 = arith.constant 0 : i32
    %c0_i32_0 = arith.constant 0 : i32
    return %c0_i32, %arg0 : i32, i32
  }
  func.func @transform_7(%arg0: i32) -> (i32, i32) {
    %c0_i32 = arith.constant 0 : i32
    %c0_i32_0 = arith.constant 0 : i32
    return %c0_i32, %arg0 : i32, i32
  }
}

</mosaic_0001>

<llo_original>
// kernel: generator_forward.1
$region0: #{generator_forward.1}
  #allocation0 [shape = 'u32[]', space=smem, size = 0x4, offset = 0x4, fixed_abs, tag = 'smem constant byte address 0x4 - core index']
  #allocation1 [shape = 'u32[144,128]{1,0:T(1,128)}', space=vmem, size = 0x12000, scoped, tag = 'internal scratch']
  #allocation2 [shape = 'f32[16,384]{1,0:T(8,128)}', space=vmem, size = 0x6000, scoped, tag = 'scratch operand']
  %s0 = inlined_call_operand.vmem [shape: f32[16,128], index: 0, kind: input, shape index: {}]
  %s1 = inlined_call_operand.vmem [shape: f32[16,1], index: 1, kind: input, shape index: {}]
  %s2 = inlined_call_operand.hbm [shape: f32[128,128], index: 2, kind: input, shape index: {}]
  %s3 = inlined_call_operand.hbm [shape: f32[256,128], index: 3, kind: input, shape index: {}]
  %s4 = inlined_call_operand.vmem [shape: f32[4,128], index: 4, kind: input, shape index: {}]
  %s5 = inlined_call_operand.hbm [shape: f32[384,256], index: 5, kind: input, shape index: {}]
  %s6 = inlined_call_operand.vmem [shape: f32[1,256], index: 6, kind: input, shape index: {}]
  %s7 = inlined_call_operand.vmem [shape: f32[16,256], index: 7, kind: output, shape index: {}]
  %s8 = sld [smem:[#allocation0]]
  $region111: #{generator_forward.1} parent=0
    _
  %s10 = ssub.s32 1, %s8
  %s11 = scalar_select 0, %s10, %s8
  $region1: #{generator_forward.1} parent=0
    #allocation3 [shape = 'u8[65536]{0}', space=vmem, size = 0x10000, scoped, tag = 'input window, operand 2, single buffered']
    #allocation4 [shape = 's32[2]{0}', space=sflag, size = 0x8, scoped, tag = 'scoped memory for generator_forward.1']
    #allocation5 [shape = 'u8[131072]{0}', space=vmem, size = 0x20000, scoped, tag = 'input window, operand 3, single buffered']
    #allocation6 [shape = 's32[1]{0}', space=sflag, size = 0x4, scoped, tag = 'scoped memory for generator_forward.1']
    #allocation7 [shape = 'u8[393216]{0}', space=vmem, size = 0x60000, scoped, tag = 'input window, operand 5']
    #allocation8 [shape = 'u8[16384]{0}', space=vmem, size = 0x4000, scoped, tag = 'output window, operand 0']
    %12 = vsyncpa [#allocation4], 0
    %13 = vsyncpa [#allocation6], 0
    loop: start=0, step=1, limit=4
    $region2: #{generator_forward.1} parent=1 // loop_pre_header
      _
    $region3: #{generator_forward.1} parent=1 // loop_header
      %s15 = sphi 0, %s19
      %p16 = scmp.ge.s32.totalorder %s15, 4
      %s23 = sphi 0, %s23
      %s25 = sphi 0, %s23
      %s26 = sphi 0, %s25
      %s40 = sphi 0, %s26
      %s44 = sphi 0, %s44
      %s46 = sphi 0, %s44
      %s47 = sphi 0, %s46
      %s61 = sphi 0, %s47
      %s65 = sphi 0, %s65
      %s67 = sphi 0, %s65
      %s68 = sphi 0, %s67
      %s82 = sphi 0, %s68
      %s86 = sphi 0, %s86
      %s88 = sphi 0, %s86
      %s89 = sphi 0, %s88
      %s103 = sphi 0, %s89
      %s107 = sphi 0, %s107
      %s109 = sphi 0, %s107
      %s110 = sphi 0, %s109
      %s124 = sphi 0, %s110
      %s130 = sphi 0, %s132
      %s133 = sphi 0, %s130
      %s134 = sphi 0, %s133
      %s150 = sphi 0, %s134
      %s156 = sphi 0, %s158
      %s159 = sphi 0, %s156
      %s160 = sphi 0, %s159
      %s176 = sphi 0, %s160
      %s182 = sphi 0, %s184
      %s185 = sphi 0, %s182
      %s186 = sphi 0, %s185
      %s202 = sphi 0, %s186
    $region4: #{generator_forward.1} parent=1 // loop_header_branch
      %18 = sbr.rel (%p16) target = $region8
    $region5: #{generator_forward.1} parent=1 // loop_body
      %s20 = ssub.s32 %s15, 1
      %s21 = ssub.s32 %s15, 2
      %s22 = sadd.s32 %s15, 1
      %s24 = sadd.s32 %s23, 1
      %p27 = scmp.eq.s32.totalorder %s15, 1
      %p28 = scmp.ne.s32.totalorder %s23, %s25
      %p29 = scmp.eq.s32.totalorder %s15, 0
      %p30 = por %p28, %p29
      %p31 = scmp.ne.s32.totalorder %s23, %s25
      %p32 = scmp.eq.s32.totalorder %s20, 1
      %p33 = por %p31, %p32
      %p34 = scmp.ne.s32.totalorder %s25, %s26
      %p35 = scmp.eq.s32.totalorder %s20, 0
      %p36 = por %p34, %p35
      %p37 = scmp.ne.s32.totalorder %s25, %s26
      %p38 = scmp.eq.s32.totalorder %s21, 1
      %p39 = por %p37, %p38
      %p41 = scmp.ne.s32.totalorder %s26, %s40
      %p42 = scmp.eq.s32.totalorder %s21, 0
      %p43 = por %p41, %p42
      %s45 = sadd.s32 %s44, 1
      %p48 = scmp.eq.s32.totalorder %s15, 1
      %p49 = scmp.ne.s32.totalorder %s44, %s46
      %p50 = scmp.eq.s32.totalorder %s15, 0
      %p51 = por %p49, %p50
      %p52 = scmp.ne.s32.totalorder %s44, %s46
      %p53 = scmp.eq.s32.totalorder %s20, 1
      %p54 = por %p52, %p53
      %p55 = scmp.ne.s32.totalorder %s46, %s47
      %p56 = scmp.eq.s32.totalorder %s20, 0
      %p57 = por %p55, %p56
      %p58 = scmp.ne.s32.totalorder %s46, %s47
      %p59 = scmp.eq.s32.totalorder %s21, 1
      %p60 = por %p58, %p59
      %p62 = scmp.ne.s32.totalorder %s47, %s61
      %p63 = scmp.eq.s32.totalorder %s21, 0
      %p64 = por %p62, %p63
      %s66 = sadd.s32 %s65, 1
      %p69 = scmp.eq.s32.totalorder %s15, 1
      %p70 = scmp.ne.s32.totalorder %s65, %s67
      %p71 = scmp.eq.s32.totalorder %s15, 0
      %p72 = por %p70, %p71
      %p73 = scmp.ne.s32.totalorder %s65, %s67
      %p74 = scmp.eq.s32.totalorder %s20, 1
      %p75 = por %p73, %p74
      %p76 = scmp.ne.s32.totalorder %s67, %s68
      %p77 = scmp.eq.s32.totalorder %s20, 0
      %p78 = por %p76, %p77
      %p79 = scmp.ne.s32.totalorder %s67, %s68
      %p80 = scmp.eq.s32.totalorder %s21, 1
      %p81 = por %p79, %p80
      %p83 = scmp.ne.s32.totalorder %s68, %s82
      %p84 = scmp.eq.s32.totalorder %s21, 0
      %p85 = por %p83, %p84
      %s87 = sadd.s32 %s86, 1
      %p90 = scmp.eq.s32.totalorder %s15, 1
      %p91 = scmp.ne.s32.totalorder %s86, %s88
      %p92 = scmp.eq.s32.totalorder %s15, 0
      %p93 = por %p91, %p92
      %p94 = scmp.ne.s32.totalorder %s86, %s88
      %p95 = scmp.eq.s32.totalorder %s20, 1
      %p96 = por %p94, %p95
      %p97 = scmp.ne.s32.totalorder %s88, %s89
      %p98 = scmp.eq.s32.totalorder %s20, 0
      %p99 = por %p97, %p98
      %p100 = scmp.ne.s32.totalorder %s88, %s89
      %p101 = scmp.eq.s32.totalorder %s21, 1
      %p102 = por %p100, %p101
      %p104 = scmp.ne.s32.totalorder %s89, %s103
      %p105 = scmp.eq.s32.totalorder %s21, 0
      %p106 = por %p104, %p105
      %s108 = sadd.s32 %s107, 1
      %p111 = scmp.eq.s32.totalorder %s15, 1
      %p112 = scmp.ne.s32.totalorder %s107, %s109
      %p113 = scmp.eq.s32.totalorder %s15, 0
      %p114 = por %p112, %p113
      %p115 = scmp.ne.s32.totalorder %s107, %s109
      %p116 = scmp.eq.s32.totalorder %s20, 1
      %p117 = por %p115, %p116
      %p118 = scmp.ne.s32.totalorder %s109, %s110
      %p119 = scmp.eq.s32.totalorder %s20, 0
      %p120 = por %p118, %p119
      %p121 = scmp.ne.s32.totalorder %s109, %s110
      %p122 = scmp.eq.s32.totalorder %s21, 1
      %p123 = por %p121, %p122
      %p125 = scmp.ne.s32.totalorder %s110, %s124
      %p126 = scmp.eq.s32.totalorder %s21, 0
      %p127 = por %p125, %p126
      %s128 = ssub.s32 %s15, %s22
      %p129 = scmp.eq.s32.totalorder %s128, 0
      %s131 = sadd.s32 %s130, 1
      %s132 = scalar_select %p129, %s130, %s131
      %p135 = pneg %p129
      %p136 = scmp.eq.s32.totalorder %s15, 1
      %p137 = por %p135, %p136
      %p138 = scmp.ne.s32.totalorder %s130, %s133
      %p139 = scmp.eq.s32.totalorder %s15, 0
      %p140 = por %p138, %p139
      %p141 = scmp.ne.s32.totalorder %s130, %s133
      %p142 = scmp.eq.s32.totalorder %s20, 1
      %p143 = por %p141, %p142
      %p144 = scmp.ne.s32.totalorder %s133, %s134
      %p145 = scmp.eq.s32.totalorder %s20, 0
      %p146 = por %p144, %p145
      %p147 = scmp.ne.s32.totalorder %s133, %s134
      %p148 = scmp.eq.s32.totalorder %s21, 1
      %p149 = por %p147, %p148
      %p151 = scmp.ne.s32.totalorder %s134, %s150
      %p152 = scmp.eq.s32.totalorder %s21, 0
      %p153 = por %p151, %p152
      %s154 = ssub.s32 %s15, %s22
      %p155 = scmp.eq.s32.totalorder %s154, 0
      %s157 = sadd.s32 %s156, 1
      %s158 = scalar_select %p155, %s156, %s157
      %p161 = pneg %p155
      %p162 = scmp.eq.s32.totalorder %s15, 1
      %p163 = por %p161, %p162
      %p164 = scmp.ne.s32.totalorder %s156, %s159
      %p165 = scmp.eq.s32.totalorder %s15, 0
      %p166 = por %p164, %p165
      %p167 = scmp.ne.s32.totalorder %s156, %s159
      %p168 = scmp.eq.s32.totalorder %s20, 1
      %p169 = por %p167, %p168
      %p170 = scmp.ne.s32.totalorder %s159, %s160
      %p171 = scmp.eq.s32.totalorder %s20, 0
      %p172 = por %p170, %p171
      %p173 = scmp.ne.s32.totalorder %s159, %s160
      %p174 = scmp.eq.s32.totalorder %s21, 1
      %p175 = por %p173, %p174
      %p177 = scmp.ne.s32.totalorder %s160, %s176
      %p178 = scmp.eq.s32.totalorder %s21, 0
      %p179 = por %p177, %p178
      %s180 = ssub.s32 %s15, %s22
      %p181 = scmp.eq.s32.totalorder %s180, 0
      %s183 = sadd.s32 %s182, 1
      %s184 = scalar_select %p181, %s182, %s183
      %p187 = pneg %p181
      %p188 = scmp.eq.s32.totalorder %s15, 1
      %p189 = por %p187, %p188
      %p190 = scmp.ne.s32.totalorder %s182, %s185
      %p191 = scmp.eq.s32.totalorder %s15, 0
      %p192 = por %p190, %p191
      %p193 = scmp.ne.s32.totalorder %s182, %s185
      %p194 = scmp.eq.s32.totalorder %s20, 1
      %p195 = por %p193, %p194
      %p196 = scmp.ne.s32.totalorder %s185, %s186
      %p197 = scmp.eq.s32.totalorder %s20, 0
      %p198 = por %p196, %p197
      %p199 = scmp.ne.s32.totalorder %s185, %s186
      %p200 = scmp.eq.s32.totalorder %s21, 1
      %p201 = por %p199, %p200
      %p203 = scmp.ne.s32.totalorder %s186, %s202
      %p204 = scmp.eq.s32.totalorder %s21, 0
      %p205 = por %p203, %p204
      %p206 = scmp.le.s32.totalorder 1, %s15
      %p207 = scmp.lt.s32.totalorder %s15, 3
      %p208 = pnand %p206, %p207
      %p209 = pneg %p208
      // Predicated region
      $region9: #{generator_forward.1} parent=5 // pred_check
        _
      $region10: #{generator_forward.1} parent=5 // pred_check_branch
        %211 = sbr.rel (%p208) target = $region12
      $region11: #{generator_forward.1} parent=5 // pred_region
        %s212 = ssub.s32 %s15, 1
        // Predicated region
        $region13: #{generator_forward.1} parent=11 // pred_check
          %p213 = pneg %p36
        $region14: #{generator_forward.1} parent=11 // pred_check_branch
          %215 = sbr.rel (%p213) target = $region16
        $region15: #{generator_forward.1} parent=11 // pred_region
          _
        $region16: #{generator_forward.1} parent=11 // pred_fallthru
          _
        // Predicated region
        $region17: #{generator_forward.1} parent=11 // pred_check
          %p216 = pneg %p57
        $region18: #{generator_forward.1} parent=11 // pred_check_branch
          %218 = sbr.rel (%p216) target = $region20
        $region19: #{generator_forward.1} parent=11 // pred_region
          _
        $region20: #{generator_forward.1} parent=11 // pred_fallthru
          _
        // Predicated region
        $region21: #{generator_forward.1} parent=11 // pred_check
          %p219 = pneg %p78
        $region22: #{generator_forward.1} parent=11 // pred_check_branch
          %221 = sbr.rel (%p219) target = $region24
        $region23: #{generator_forward.1} parent=11 // pred_region
          %s223 = ssub.s32 2048, 2048
          %224 = vsyncadd [#allocation4], %s223
          %s225 = sshll.u32 [#allocation3], 4
          %s226 = int_to_ptr.vmem [resolvable:$true] %s225
          %231 = dma.hbm_to_vmem [thread:$0]  %s2, 2048, %s226, [#allocation4], 128, 128, 8
        $region24: #{generator_forward.1} parent=11 // pred_fallthru
          _
        // Predicated region
        $region25: #{generator_forward.1} parent=11 // pred_check
          %p232 = pneg %p99
        $region26: #{generator_forward.1} parent=11 // pred_check_branch
          %234 = sbr.rel (%p232) target = $region28
        $region27: #{generator_forward.1} parent=11 // pred_region
          %s236 = ssub.s32 4096, 4096
          %237 = vsyncadd [#allocation6], %s236
          %s238 = sshll.u32 [#allocation5], 4
          %s239 = int_to_ptr.vmem [resolvable:$true] %s238
          %244 = dma.hbm_to_vmem [thread:$0]  %s3, 4096, %s239, [#allocation6], 128, 128, 8
        $region28: #{generator_forward.1} parent=11 // pred_fallthru
          _
        // Predicated region
        $region29: #{generator_forward.1} parent=11 // pred_check
          %p245 = pneg %p120
        $region30: #{generator_forward.1} parent=11 // pred_check_branch
          %247 = sbr.rel (%p245) target = $region32
        $region31: #{generator_forward.1} parent=11 // pred_region
          _
        $region32: #{generator_forward.1} parent=11 // pred_fallthru
          _
      $region12: #{generator_forward.1} parent=5 // pred_fallthru
        _
      %p248 = scmp.lt.s32.totalorder %s15, 2
      // Predicated region
      $region33: #{generator_forward.1} parent=5 // pred_check
        %p249 = pneg %p248
      $region34: #{generator_forward.1} parent=5 // pred_check_branch
        %251 = sbr.rel (%p249) target = $region36
      $region35: #{generator_forward.1} parent=5 // pred_region
        // Predicated region
        $region37: #{generator_forward.1} parent=35 // pred_check
          %p252 = pneg %p140
        $region38: #{generator_forward.1} parent=35 // pred_check_branch
          %254 = sbr.rel (%p252) target = $region40
        $region39: #{generator_forward.1} parent=35 // pred_region
          %s255 = sand.u32 %s15, 1
          %s256 = scalar_lea.sflag [#allocation4], %s255
          %s257 = sand.u32 %s130, 1
          %s258 = smul.addr %s257, 384
          %s259 = scalar_lea.vmem [#allocation7], %s258
          %s261 = ssub.s32 6144, 6144
          %262 = vsyncadd %s256, %s261
          %s263 = smul.addr %s15, 128
          %s264 = scalar_lea.hbm %s5, %s263
          %s265 = sshll.u32 %s259, 4
          %s266 = int_to_ptr.vmem [resolvable:$true] %s265
          %271 = dma.hbm_to_vmem [thread:$0]  %s264, 6144, %s266, %s256, 256, 128, 8
        $region40: #{generator_forward.1} parent=35 // pred_fallthru
          _
        // Predicated region
        $region41: #{generator_forward.1} parent=35 // pred_check
          %p272 = pneg %p166
        $region42: #{generator_forward.1} parent=35 // pred_check_branch
          %274 = sbr.rel (%p272) target = $region44
        $region43: #{generator_forward.1} parent=35 // pred_region
          %p275 = scmp.lt.s32.totalorder %s15, 1
          %s276 = scalar_select %p275, %s15, 1
          %s277 = scalar_lea.vmem %s6, %s276
        $region44: #{generator_forward.1} parent=35 // pred_fallthru
          _
      $region36: #{generator_forward.1} parent=5 // pred_fallthru
        _
      %p278 = scmp.le.s32.totalorder 1, %s15
      %p279 = scmp.lt.s32.totalorder %s15, 3
      %p280 = pnand %p278, %p279
      %p281 = pneg %p280
      // Predicated region
      $region45: #{generator_forward.1} parent=5 // pred_check
        _
      $region46: #{generator_forward.1} parent=5 // pred_check_branch
        %283 = sbr.rel (%p280) target = $region48
      $region47: #{generator_forward.1} parent=5 // pred_region
        %s284 = ssub.s32 %s15, 1
        // Predicated region
        $region49: #{generator_forward.1} parent=47 // pred_check
          %p285 = pneg %p78
        $region50: #{generator_forward.1} parent=47 // pred_check_branch
          %287 = sbr.rel (%p285) target = $region52
        $region51: #{generator_forward.1} parent=47 // pred_region
          %288 = dma.done [#allocation4], 2048
        $region52: #{generator_forward.1} parent=47 // pred_fallthru
          _
        // Predicated region
        $region53: #{generator_forward.1} parent=47 // pred_check
          %p289 = pneg %p99
        $region54: #{generator_forward.1} parent=47 // pred_check_branch
          %291 = sbr.rel (%p289) target = $region56
        $region55: #{generator_forward.1} parent=47 // pred_region
          %292 = dma.done [#allocation6], 4096
        $region56: #{generator_forward.1} parent=47 // pred_fallthru
          _
        %s293 = sand.u32 %s20, 1
        %s294 = scalar_lea.sflag [#allocation4], %s293
        %s295 = sand.u32 %s133, 1
        %s296 = smul.addr %s295, 384
        %s297 = scalar_lea.vmem [#allocation7], %s296
        // Predicated region
        $region57: #{generator_forward.1} parent=47 // pred_check
          %p298 = pneg %p146
        $region58: #{generator_forward.1} parent=47 // pred_check_branch
          %300 = sbr.rel (%p298) target = $region60
        $region59: #{generator_forward.1} parent=47 // pred_region
          %301 = dma.done %s294, 6144
        $region60: #{generator_forward.1} parent=47 // pred_fallthru
          _
        %p302 = pneg %p36
        %p303 = pneg %p33
        %p304 = pneg %p57
        %p305 = pneg %p54
        %p306 = pneg %p78
        %p307 = pneg %p75
        %p308 = pneg %p99
        %p309 = pneg %p96
        %p310 = pneg %p120
        %p311 = pneg %p117
        %s312 = sand.u32 %s20, 1
        %s313 = scalar_lea.sflag [#allocation4], %s312
        %s314 = sand.u32 %s133, 1
        %s315 = smul.addr %s314, 384
        %s316 = scalar_lea.vmem [#allocation7], %s315
        %p317 = pneg %p146
        %p318 = pneg %p143
        %p319 = scmp.lt.s32.totalorder %s20, 1
        %s320 = scalar_select %p319, %s20, 1
        %s321 = scalar_lea.vmem %s6, %s320
        %p322 = pneg %p172
        %p323 = pneg %p169
        %p324 = pneg %p198
        %p325 = pneg %p195
        %s326 = sand.u32 %s185, 1
        %s327 = sand.u32 %s185, 1
        %s328 = smul.addr %s327, 16
        %s329 = scalar_lea.vmem [#allocation8], %s328
        %p330 = scmp.lt.s32.totalorder %s20, 1
        %s331 = scalar_select %p330, %s20, 1
        %s332 = scalar_lea.vmem %s6, %s331
        %p333 = scmp.eq.s32.totalorder %s20, 0
        // Predicated region
        $region61: #{generator_forward.1} parent=47 // pred_check
          %p334 = pneg %p333
        $region62: #{generator_forward.1} parent=47 // pred_check_branch
          %336 = sbr.rel (%p334) target = $region64
        $region63: #{generator_forward.1} parent=47 // pred_region
          %v337 = vld [vmem:[%s0] sm:$0xff]
          %v338 = vld [vmem:[%s0 + $0x8] sm:$0xff]
          %339 = vst [vmem:[#allocation2] sm:$0xff] %v337
          %340 = vst [vmem:[#allocation2 + $0x18] sm:$0xff] %v338
          %v341 = vld [vmem:[%s1] sm:$0xff]
          %v342 = vld [vmem:[%s1 + $0x8] sm:$0xff]
          %v343 = vld [vmem:[#allocation2] sm:$0xff]
          %v344 = vld [vmem:[#allocation2 + $0x18] sm:$0xff]
          %v345 = vld [vmem:[#allocation3] sm:$0xff]
          %v346 = vld [vmem:[#allocation3 + $0x8] sm:$0xff]
          %v347 = vld [vmem:[#allocation3 + $0x10] sm:$0xff]
          %v348 = vld [vmem:[#allocation3 + $0x18] sm:$0xff]
          %v349 = vld [vmem:[#allocation3 + $0x20] sm:$0xff]
          %v350 = vld [vmem:[#allocation3 + $0x28] sm:$0xff]
          %v351 = vld [vmem:[#allocation3 + $0x30] sm:$0xff]
          %v352 = vld [vmem:[#allocation3 + $0x38] sm:$0xff]
          %v353 = vld [vmem:[#allocation3 + $0x40] sm:$0xff]
          %v354 = vld [vmem:[#allocation3 + $0x48] sm:$0xff]
          %v355 = vld [vmem:[#allocation3 + $0x50] sm:$0xff]
          %v356 = vld [vmem:[#allocation3 + $0x58] sm:$0xff]
          %v357 = vld [vmem:[#allocation3 + $0x60] sm:$0xff]
          %v358 = vld [vmem:[#allocation3 + $0x68] sm:$0xff]
          %v359 = vld [vmem:[#allocation3 + $0x70] sm:$0xff]
          %v360 = vld [vmem:[#allocation3 + $0x78] sm:$0xff]
          %361 = vmatprep.subr.mxu0 0.0
          %362 = vmatpush1.msra.mxu0 %v345
          %363 = vmatprep.subr.mxu0 0.0
          %364 = vmatpush1.msra.mxu0 %v346
          %365 = vmatprep.subr.mxu0 0.0
          %366 = vmatpush1.msra.mxu0 %v347
          %367 = vmatprep.subr.mxu0 0.0
          %368 = vmatpush1.msra.mxu0 %v348
          %369 = vmatprep.subr.mxu0 0.0
          %370 = vmatpush1.msra.mxu0 %v349
          %371 = vmatprep.subr.mxu0 0.0
          %372 = vmatpush1.msra.mxu0 %v350
          %373 = vmatprep.subr.mxu0 0.0
          %374 = vmatpush1.msra.mxu0 %v351
          %375 = vmatprep.subr.mxu0 0.0
          %376 = vmatpush1.msra.mxu0 %v352
          %377 = vmatprep.subr.mxu0 0.0
          %378 = vmatpush1.msra.mxu0 %v353
          %379 = vmatprep.subr.mxu0 0.0
          %380 = vmatpush1.msra.mxu0 %v354
          %381 = vmatprep.subr.mxu0 0.0
          %382 = vmatpush1.msra.mxu0 %v355
          %383 = vmatprep.subr.mxu0 0.0
          %384 = vmatpush1.msra.mxu0 %v356
          %385 = vmatprep.subr.mxu0 0.0
          %386 = vmatpush1.msra.mxu0 %v357
          %387 = vmatprep.subr.mxu0 0.0
          %388 = vmatpush1.msra.mxu0 %v358
          %389 = vmatprep.subr.mxu0 0.0
          %390 = vmatpush1.msra.mxu0 %v359
          %391 = vmatprep.subr.mxu0 0.0
          %392 = vmatpush1.msra.mxu0 %v360
          %393 = vmatprep.subr.mxu0 0.0
          %394 = vmatpush1.msra.mxu0 0.0
          %395 = vmatprep.subr.mxu0 0.0
          %396 = vmatpush1.msra.mxu0 0.0
          %397 = vmatprep.subr.mxu0 0.0
          %398 = vmatpush1.msra.mxu0 0.0
          %399 = vmatprep.subr.mxu0 0.0
          %400 = vmatpush1.msra.mxu0 0.0
          %401 = vmatprep.subr.mxu0 0.0
          %402 = vmatpush1.msra.mxu0 0.0
          %403 = vmatprep.subr.mxu0 0.0
          %404 = vmatpush1.msra.mxu0 0.0
          %405 = vmatprep.subr.mxu0 0.0
          %406 = vmatpush1.msra.mxu0 0.0
          %407 = vmatprep.subr.mxu0 0.0
          %408 = vmatpush1.msra.mxu0 0.0
          %409 = vmatprep.subr.mxu0 0.0
          %410 = vmatpush1.msra.mxu0 0.0
          %411 = vmatprep.subr.mxu0 0.0
          %412 = vmatpush1.msra.mxu0 0.0
          %413 = vmatprep.subr.mxu0 0.0
          %414 = vmatpush1.msra.mxu0 0.0
          %415 = vmatprep.subr.mxu0 0.0
          %416 = vmatpush1.msra.mxu0 0.0
          %417 = vmatprep.subr.mxu0 0.0
          %418 = vmatpush1.msra.mxu0 0.0
          %419 = vmatprep.subr.mxu0 0.0
          %420 = vmatpush1.msra.mxu0 0.0
          %421 = vmatprep.subr.mxu0 0.0
          %422 = vmatpush1.msra.mxu0 0.0
          %423 = vmatprep.subr.mxu0 0.0
          %424 = vmatpush1.msra.mxu0 0.0
          %425 = vmatprep.mubr.f32.mxu0 0.0
          %426 = vmatmul.mubr.f32.gmra.mrb[0].mxu0 %v343
          %v427 = vpop.f32.mrb[0].mxu0
          %v428 = vadd.f32 0.0, %v427
          %v429 = vpop.f32.mrb[0].mxu0
          %430 = vmatprep.mubr.f32.mxu0 0.0
          %431 = vmatmul.mubr.f32.gmra.mrb[0].mxu0 %v344
          %v432 = vpop.f32.mrb[0].mxu0
          %v433 = vadd.f32 0.0, %v432
          %v434 = vpop.f32.mrb[0].mxu0
          %435 = vdwg.mxu0
          %v436 = vadd.f32 %v428, %v433
          %v437 = vrot.slane %v436, 4
          %v438 = vadd.f32 %v436, %v437
          %v439 = vrot.slane %v438, 2
          %v440 = vadd.f32 %v438, %v439
          %v441 = vrot.slane %v440, 1
          %v442 = vadd.f32 %v440, %v441
          %v443 = vmul.f32 %v428, %v428
          %v444 = vmul.f32 %v433, %v433
          %v445 = vadd.f32 %v443, %v444
          %v446 = vrot.slane %v445, 4
          %v447 = vadd.f32 %v445, %v446
          %v448 = vrot.slane %v447, 2
          %v449 = vadd.f32 %v447, %v448
          %v450 = vrot.slane %v449, 1
          %v451 = vadd.f32 %v449, %v450
          %v452 = vmul.f32 %v442, 0.125
          %v453 = vmul.f32 %v451, 0.125
          %v454 = vmul.f32 %v452, %v452
          %v455 = vsub.f32 %v453, %v454
          %v456 = vmax.f32 %v455, 0.0
          %v457 = vld [vmem:[%s4] sm:$0x1]
          %v458 = vld [vmem:[%s4 + $0x1] sm:$0x1]
          %v459 = vadd.f32 %v456, 1e-05
          %v460 = vrsqrt.pop %v459
          %v461 = vmul.f32 %v457, %v460
          %v462 = vmul.f32 %v461, %v452
          %v463 = vsub.f32 %v458, %v462
          %v464 = vlaneseq
          %v465 = vshrl.u32 %v464, 7
          %v466 = vsub.s32 0, %v465
          %v467 = vrot.slane %v461, %v466
          %v468 = vmul.f32 %v428, %v467
          %v469 = vmul.f32 %v433, %v467
          %v470 = vlaneseq
          %v471 = vshrl.u32 %v470, 7
          %v472 = vsub.s32 0, %v471
          %v473 = vrot.slane %v463, %v472
          %v474 = vadd.f32 %v468, %v473
          %v475 = vadd.f32 %v469, %v473
          %v476 = vmax.f32 %v474, 0.0
          %v477 = vmax.f32 %v475, 0.0
          %479 = vset.pattern.permute.xlu0 0
          %480 = vperm.xlu0 %479, %v341
          %v481 = vpop.permute.xlu0 %480
          %484 = vset.pattern.permute.xlu0 0
          %485 = vperm.xlu0 %484, %v342
          %v486 = vpop.permute.xlu0 %485
          %v488 = vmul.f32 %v476, %v481
          %v489 = vmul.f32 %v477, %v486
          %490 = vst [vmem:[#allocation2 + $0x8] sm:$0xff] %v488
          %491 = vst [vmem:[#allocation2 + $0x20] sm:$0xff] %v489
          %v492 = vld [vmem:[#allocation2] sm:$0xff]
          %v493 = vld [vmem:[#allocation2 + $0x8] sm:$0xff]
          %v494 = vld [vmem:[#allocation2 + $0x18] sm:$0xff]
          %v495 = vld [vmem:[#allocation2 + $0x20] sm:$0xff]
          %v496 = vld [vmem:[#allocation5] sm:$0xff]
          %v497 = vld [vmem:[#allocation5 + $0x8] sm:$0xff]
          %v498 = vld [vmem:[#allocation5 + $0x10] sm:$0xff]
          %v499 = vld [vmem:[#allocation5 + $0x18] sm:$0xff]
          %v500 = vld [vmem:[#allocation5 + $0x20] sm:$0xff]
          %v501 = vld [vmem:[#allocation5 + $0x28] sm:$0xff]
          %v502 = vld [vmem:[#allocation5 + $0x30] sm:$0xff]
          %v503 = vld [vmem:[#allocation5 + $0x38] sm:$0xff]
          %v504 = vld [vmem:[#allocation5 + $0x40] sm:$0xff]
          %v505 = vld [vmem:[#allocation5 + $0x48] sm:$0xff]
          %v506 = vld [vmem:[#allocation5 + $0x50] sm:$0xff]
          %v507 = vld [vmem:[#allocation5 + $0x58] sm:$0xff]
          %v508 = vld [vmem:[#allocation5 + $0x60] sm:$0xff]
          %v509 = vld [vmem:[#allocation5 + $0x68] sm:$0xff]
          %v510 = vld [vmem:[#allocation5 + $0x70] sm:$0xff]
          %v511 = vld [vmem:[#allocation5 + $0x78] sm:$0xff]
          %v512 = vld [vmem:[#allocation5 + $0x80] sm:$0xff]
          %v513 = vld [vmem:[#allocation5 + $0x88] sm:$0xff]
          %v514 = vld [vmem:[#allocation5 + $0x90] sm:$0xff]
          %v515 = vld [vmem:[#allocation5 + $0x98] sm:$0xff]
          %v516 = vld [vmem:[#allocation5 + $0xa0] sm:$0xff]
          %v517 = vld [vmem:[#allocation5 + $0xa8] sm:$0xff]
          %v518 = vld [vmem:[#allocation5 + $0xb0] sm:$0xff]
          %v519 = vld [vmem:[#allocation5 + $0xb8] sm:$0xff]
          %v520 = vld [vmem:[#allocation5 + $0xc0] sm:$0xff]
          %v521 = vld [vmem:[#allocation5 + $0xc8] sm:$0xff]
          %v522 = vld [vmem:[#allocation5 + $0xd0] sm:$0xff]
          %v523 = vld [vmem:[#allocation5 + $0xd8] sm:$0xff]
          %v524 = vld [vmem:[#allocation5 + $0xe0] sm:$0xff]
          %v525 = vld [vmem:[#allocation5 + $0xe8] sm:$0xff]
          %v526 = vld [vmem:[#allocation5 + $0xf0] sm:$0xff]
          %v527 = vld [vmem:[#allocation5 + $0xf8] sm:$0xff]
          %528 = vmatprep.subr.mxu0 0.0
          %529 = vmatpush1.msra.mxu0 %v496
          %530 = vmatprep.subr.mxu0 0.0
          %531 = vmatpush1.msra.mxu0 %v497
          %532 = vmatprep.subr.mxu0 0.0
          %533 = vmatpush1.msra.mxu0 %v498
          %534 = vmatprep.subr.mxu0 0.0
          %535 = vmatpush1.msra.mxu0 %v499
          %536 = vmatprep.subr.mxu0 0.0
          %537 = vmatpush1.msra.mxu0 %v500
          %538 = vmatprep.subr.mxu0 0.0
          %539 = vmatpush1.msra.mxu0 %v501
          %540 = vmatprep.subr.mxu0 0.0
          %541 = vmatpush1.msra.mxu0 %v502
          %542 = vmatprep.subr.mxu0 0.0
          %543 = vmatpush1.msra.mxu0 %v503
          %544 = vmatprep.subr.mxu0 0.0
          %545 = vmatpush1.msra.mxu0 %v504
          %546 = vmatprep.subr.mxu0 0.0
          %547 = vmatpush1.msra.mxu0 %v505
          %548 = vmatprep.subr.mxu0 0.0
          %549 = vmatpush1.msra.mxu0 %v506
          %550 = vmatprep.subr.mxu0 0.0
          %551 = vmatpush1.msra.mxu0 %v507
          %552 = vmatprep.subr.mxu0 0.0
          %553 = vmatpush1.msra.mxu0 %v508
          %554 = vmatprep.subr.mxu0 0.0
          %555 = vmatpush1.msra.mxu0 %v509
          %556 = vmatprep.subr.mxu0 0.0
          %557 = vmatpush1.msra.mxu0 %v510
          %558 = vmatprep.subr.mxu0 0.0
          %559 = vmatpush1.msra.mxu0 %v511
          %560 = vmatprep.subr.mxu0 0.0
          %561 = vmatpush1.msra.mxu0 %v512
          %562 = vmatprep.subr.mxu0 0.0
          %563 = vmatpush1.msra.mxu0 %v513
          %564 = vmatprep.subr.mxu0 0.0
          %565 = vmatpush1.msra.mxu0 %v514
          %566 = vmatprep.subr.mxu0 0.0
          %567 = vmatpush1.msra.mxu0 %v515
          %568 = vmatprep.subr.mxu0 0.0
          %569 = vmatpush1.msra.mxu0 %v516
          %570 = vmatprep.subr.mxu0 0.0
          %571 = vmatpush1.msra.mxu0 %v517
          %572 = vmatprep.subr.mxu0 0.0
          %573 = vmatpush1.msra.mxu0 %v518
          %574 = vmatprep.subr.mxu0 0.0
          %575 = vmatpush1.msra.mxu0 %v519
          %576 = vmatprep.subr.mxu0 0.0
          %577 = vmatpush1.msra.mxu0 %v520
          %578 = vmatprep.subr.mxu0 0.0
          %579 = vmatpush1.msra.mxu0 %v521
          %580 = vmatprep.subr.mxu0 0.0
          %581 = vmatpush1.msra.mxu0 %v522
          %582 = vmatprep.subr.mxu0 0.0
          %583 = vmatpush1.msra.mxu0 %v523
          %584 = vmatprep.subr.mxu0 0.0
          %585 = vmatpush1.msra.mxu0 %v524
          %586 = vmatprep.subr.mxu0 0.0
          %587 = vmatpush1.msra.mxu0 %v525
          %588 = vmatprep.subr.mxu0 0.0
          %589 = vmatpush1.msra.mxu0 %v526
          %590 = vmatprep.subr.mxu0 0.0
          %591 = vmatpush1.msra.mxu0 %v527
          %592 = vmatprep.mubr.f32.mxu0 %v493
          %593 = vmatmul.mubr.f32.gmra.mrb[0].mxu0 %v492
          %v594 = vpop.f32.mrb[0].mxu0
          %v595 = vadd.f32 0.0, %v594
          %v596 = vpop.f32.mrb[0].mxu0
          %597 = vmatprep.mubr.f32.mxu0 %v495
          %598 = vmatmul.mubr.f32.gmra.mrb[0].mxu0 %v494
          %v599 = vpop.f32.mrb[0].mxu0
          %v600 = vadd.f32 0.0, %v599
          %v601 = vpop.f32.mrb[0].mxu0
          %602 = vdwg.mxu0
          %v603 = vadd.f32 %v595, %v600
          %v604 = vrot.slane %v603, 4
          %v605 = vadd.f32 %v603, %v604
          %v606 = vrot.slane %v605, 2
          %v607 = vadd.f32 %v605, %v606
          %v608 = vrot.slane %v607, 1
          %v609 = vadd.f32 %v607, %v608
          %v610 = vmul.f32 %v595, %v595
          %v611 = vmul.f32 %v600, %v600
          %v612 = vadd.f32 %v610, %v611
          %v613 = vrot.slane %v612, 4
          %v614 = vadd.f32 %v612, %v613
          %v615 = vrot.slane %v614, 2
          %v616 = vadd.f32 %v614, %v615
          %v617 = vrot.slane %v616, 1
          %v618 = vadd.f32 %v616, %v617
          %v619 = vmul.f32 %v609, 0.125
          %v620 = vmul.f32 %v618, 0.125
          %v621 = vmul.f32 %v619, %v619
          %v622 = vsub.f32 %v620, %v621
          %v623 = vmax.f32 %v622, 0.0
          %v624 = vld [vmem:[%s4 + $0x2] sm:$0x1]
          %v625 = vld [vmem:[%s4 + $0x3] sm:$0x1]
          %v626 = vadd.f32 %v623, 1e-05
          %v627 = vrsqrt.pop %v626
          %v628 = vmul.f32 %v624, %v627
          %v629 = vmul.f32 %v628, %v619
          %v630 = vsub.f32 %v625, %v629
          %v631 = vlaneseq
          %v632 = vshrl.u32 %v631, 7
          %v633 = vsub.s32 0, %v632
          %v634 = vrot.slane %v628, %v633
          %v635 = vmul.f32 %v595, %v634
          %v636 = vmul.f32 %v600, %v634
          %v637 = vlaneseq
          %v638 = vshrl.u32 %v637, 7
          %v639 = vsub.s32 0, %v638
          %v640 = vrot.slane %v630, %v639
          %v641 = vadd.f32 %v635, %v640
          %v642 = vadd.f32 %v636, %v640
          %v643 = vmax.f32 %v641, 0.0
          %v644 = vmax.f32 %v642, 0.0
          %v645 = vmul.f32 %v643, %v481
          %v646 = vmul.f32 %v644, %v486
          %647 = vst [vmem:[#allocation2 + $0x10] sm:$0xff] %v645
          %648 = vst [vmem:[#allocation2 + $0x28] sm:$0xff] %v646
        $region64: #{generator_forward.1} parent=47 // pred_fallthru
          _
        %v649 = vld [vmem:[#allocation2] sm:$0xff]
        %v650 = vld [vmem:[#allocation2 + $0x8] sm:$0xff]
        %v651 = vld [vmem:[#allocation2 + $0x10] sm:$0xff]
        %v652 = vld [vmem:[#allocation2 + $0x18] sm:$0xff]
        %v653 = vld [vmem:[#allocation2 + $0x20] sm:$0xff]
        %v654 = vld [vmem:[#allocation2 + $0x28] sm:$0xff]
        %v655 = vld [vmem:[%s297] sm:$0xff]
        %v656 = vld [vmem:[%s297 + $0x8] sm:$0xff]
        %v657 = vld [vmem:[%s297 + $0x10] sm:$0xff]
        %v658 = vld [vmem:[%s297 + $0x18] sm:$0xff]
        %v659 = vld [vmem:[%s297 + $0x20] sm:$0xff]
        %v660 = vld [vmem:[%s297 + $0x28] sm:$0xff]
        %v661 = vld [vmem:[%s297 + $0x30] sm:$0xff]
        %v662 = vld [vmem:[%s297 + $0x38] sm:$0xff]
        %v663 = vld [vmem:[%s297 + $0x40] sm:$0xff]
        %v664 = vld [vmem:[%s297 + $0x48] sm:$0xff]
        %v665 = vld [vmem:[%s297 + $0x50] sm:$0xff]
        %v666 = vld [vmem:[%s297 + $0x58] sm:$0xff]
        %v667 = vld [vmem:[%s297 + $0x60] sm:$0xff]
        %v668 = vld [vmem:[%s297 + $0x68] sm:$0xff]
        %v669 = vld [vmem:[%s297 + $0x70] sm:$0xff]
        %v670 = vld [vmem:[%s297 + $0x78] sm:$0xff]
        %v671 = vld [vmem:[%s297 + $0x80] sm:$0xff]
        %v672 = vld [vmem:[%s297 + $0x88] sm:$0xff]
        %v673 = vld [vmem:[%s297 + $0x90] sm:$0xff]
        %v674 = vld [vmem:[%s297 + $0x98] sm:$0xff]
        %v675 = vld [vmem:[%s297 + $0xa0] sm:$0xff]
        %v676 = vld [vmem:[%s297 + $0xa8] sm:$0xff]
        %v677 = vld [vmem:[%s297 + $0xb0] sm:$0xff]
        %v678 = vld [vmem:[%s297 + $0xb8] sm:$0xff]
        %v679 = vld [vmem:[%s297 + $0xc0] sm:$0xff]
        %v680 = vld [vmem:[%s297 + $0xc8] sm:$0xff]
        %v681 = vld [vmem:[%s297 + $0xd0] sm:$0xff]
        %v682 = vld [vmem:[%s297 + $0xd8] sm:$0xff]
        %v683 = vld [vmem:[%s297 + $0xe0] sm:$0xff]
        %v684 = vld [vmem:[%s297 + $0xe8] sm:$0xff]
        %v685 = vld [vmem:[%s297 + $0xf0] sm:$0xff]
        %v686 = vld [vmem:[%s297 + $0xf8] sm:$0xff]
        %v687 = vld [vmem:[%s297 + $0x100] sm:$0xff]
        %v688 = vld [vmem:[%s297 + $0x108] sm:$0xff]
        %v689 = vld [vmem:[%s297 + $0x110] sm:$0xff]
        %v690 = vld [vmem:[%s297 + $0x118] sm:$0xff]
        %v691 = vld [vmem:[%s297 + $0x120] sm:$0xff]
        %v692 = vld [vmem:[%s297 + $0x128] sm:$0xff]
        %v693 = vld [vmem:[%s297 + $0x130] sm:$0xff]
        %v694 = vld [vmem:[%s297 + $0x138] sm:$0xff]
        %v695 = vld [vmem:[%s297 + $0x140] sm:$0xff]
        %v696 = vld [vmem:[%s297 + $0x148] sm:$0xff]
        %v697 = vld [vmem:[%s297 + $0x150] sm:$0xff]
        %v698 = vld [vmem:[%s297 + $0x158] sm:$0xff]
        %v699 = vld [vmem:[%s297 + $0x160] sm:$0xff]
        %v700 = vld [vmem:[%s297 + $0x168] sm:$0xff]
        %v701 = vld [vmem:[%s297 + $0x170] sm:$0xff]
        %v702 = vld [vmem:[%s297 + $0x178] sm:$0xff]
        %v703 = vld [vmem:[%s332] sm:$0x1]
        %v705 = vlaneseq
        %v706 = vshrl.u32 %v705, 7
        %v707 = vsub.s32 0, %v706
        %v708 = vrot.slane %v703, %v707
        %710 = vmatprep.subr.mxu0 0.0
        %711 = vmatpush1.msra.mxu0 %v655
        %712 = vmatprep.subr.mxu0 0.0
        %713 = vmatpush1.msra.mxu0 %v656
        %714 = vmatprep.subr.mxu0 0.0
        %715 = vmatpush1.msra.mxu0 %v657
        %716 = vmatprep.subr.mxu0 0.0
        %717 = vmatpush1.msra.mxu0 %v658
        %718 = vmatprep.subr.mxu0 0.0
        %719 = vmatpush1.msra.mxu0 %v659
        %720 = vmatprep.subr.mxu0 0.0
        %721 = vmatpush1.msra.mxu0 %v660
        %722 = vmatprep.subr.mxu0 0.0
        %723 = vmatpush1.msra.mxu0 %v661
        %724 = vmatprep.subr.mxu0 0.0
        %725 = vmatpush1.msra.mxu0 %v662
        %726 = vmatprep.subr.mxu0 0.0
        %727 = vmatpush1.msra.mxu0 %v663
        %728 = vmatprep.subr.mxu0 0.0
        %729 = vmatpush1.msra.mxu0 %v664
        %730 = vmatprep.subr.mxu0 0.0
        %731 = vmatpush1.msra.mxu0 %v665
        %732 = vmatprep.subr.mxu0 0.0
        %733 = vmatpush1.msra.mxu0 %v666
        %734 = vmatprep.subr.mxu0 0.0
        %735 = vmatpush1.msra.mxu0 %v667
        %736 = vmatprep.subr.mxu0 0.0
        %737 = vmatpush1.msra.mxu0 %v668
        %738 = vmatprep.subr.mxu0 0.0
        %739 = vmatpush1.msra.mxu0 %v669
        %740 = vmatprep.subr.mxu0 0.0
        %741 = vmatpush1.msra.mxu0 %v670
        %742 = vmatprep.subr.mxu0 0.0
        %743 = vmatpush1.msra.mxu0 %v671
        %744 = vmatprep.subr.mxu0 0.0
        %745 = vmatpush1.msra.mxu0 %v672
        %746 = vmatprep.subr.mxu0 0.0
        %747 = vmatpush1.msra.mxu0 %v673
        %748 = vmatprep.subr.mxu0 0.0
        %749 = vmatpush1.msra.mxu0 %v674
        %750 = vmatprep.subr.mxu0 0.0
        %751 = vmatpush1.msra.mxu0 %v675
        %752 = vmatprep.subr.mxu0 0.0
        %753 = vmatpush1.msra.mxu0 %v676
        %754 = vmatprep.subr.mxu0 0.0
        %755 = vmatpush1.msra.mxu0 %v677
        %756 = vmatprep.subr.mxu0 0.0
        %757 = vmatpush1.msra.mxu0 %v678
        %758 = vmatprep.subr.mxu0 0.0
        %759 = vmatpush1.msra.mxu0 %v679
        %760 = vmatprep.subr.mxu0 0.0
        %761 = vmatpush1.msra.mxu0 %v680
        %762 = vmatprep.subr.mxu0 0.0
        %763 = vmatpush1.msra.mxu0 %v681
        %764 = vmatprep.subr.mxu0 0.0
        %765 = vmatpush1.msra.mxu0 %v682
        %766 = vmatprep.subr.mxu0 0.0
        %767 = vmatpush1.msra.mxu0 %v683
        %768 = vmatprep.subr.mxu0 0.0
        %769 = vmatpush1.msra.mxu0 %v684
        %770 = vmatprep.subr.mxu0 0.0
        %771 = vmatpush1.msra.mxu0 %v685
        %772 = vmatprep.subr.mxu0 0.0
        %773 = vmatpush1.msra.mxu0 %v686
        %774 = vmatprep.mubr.f32.mxu0 %v650
        %775 = vmatmul.mubr.f32.gmra.mrb[0].mxu0 %v649
        %v776 = vpop.f32.mrb[0].mxu0
        %v777 = vadd.f32 %v708, %v776
        %v778 = vpop.f32.mrb[0].mxu0
        %779 = vmatprep.mubr.f32.mxu0 %v653
        %780 = vmatmul.mubr.f32.gmra.mrb[0].mxu0 %v652
        %v781 = vpop.f32.mrb[0].mxu0
        %v782 = vadd.f32 %v708, %v781
        %v783 = vpop.f32.mrb[0].mxu0
        %784 = vdwg.mxu0
        %785 = vmatprep.subr.mxu0 0.0
        %786 = vmatpush1.msra.mxu0 %v687
        %787 = vmatprep.subr.mxu0 0.0
        %788 = vmatpush1.msra.mxu0 %v688
        %789 = vmatprep.subr.mxu0 0.0
        %790 = vmatpush1.msra.mxu0 %v689
        %791 = vmatprep.subr.mxu0 0.0
        %792 = vmatpush1.msra.mxu0 %v690
        %793 = vmatprep.subr.mxu0 0.0
        %794 = vmatpush1.msra.mxu0 %v691
        %795 = vmatprep.subr.mxu0 0.0
        %796 = vmatpush1.msra.mxu0 %v692
        %797 = vmatprep.subr.mxu0 0.0
        %798 = vmatpush1.msra.mxu0 %v693
        %799 = vmatprep.subr.mxu0 0.0
        %800 = vmatpush1.msra.mxu0 %v694
        %801 = vmatprep.subr.mxu0 0.0
        %802 = vmatpush1.msra.mxu0 %v695
        %803 = vmatprep.subr.mxu0 0.0
        %804 = vmatpush1.msra.mxu0 %v696
        %805 = vmatprep.subr.mxu0 0.0
        %806 = vmatpush1.msra.mxu0 %v697
        %807 = vmatprep.subr.mxu0 0.0
        %808 = vmatpush1.msra.mxu0 %v698
        %809 = vmatprep.subr.mxu0 0.0
        %810 = vmatpush1.msra.mxu0 %v699
        %811 = vmatprep.subr.mxu0 0.0
        %812 = vmatpush1.msra.mxu0 %v700
        %813 = vmatprep.subr.mxu0 0.0
        %814 = vmatpush1.msra.mxu0 %v701
        %815 = vmatprep.subr.mxu0 0.0
        %816 = vmatpush1.msra.mxu0 %v702
        %817 = vmatprep.subr.mxu0 0.0
        %818 = vmatpush1.msra.mxu0 0.0
        %819 = vmatprep.subr.mxu0 0.0
        %820 = vmatpush1.msra.mxu0 0.0
        %821 = vmatprep.subr.mxu0 0.0
        %822 = vmatpush1.msra.mxu0 0.0
        %823 = vmatprep.subr.mxu0 0.0
        %824 = vmatpush1.msra.mxu0 0.0
        %825 = vmatprep.subr.mxu0 0.0
        %826 = vmatpush1.msra.mxu0 0.0
        %827 = vmatprep.subr.mxu0 0.0
        %828 = vmatpush1.msra.mxu0 0.0
        %829 = vmatprep.subr.mxu0 0.0
        %830 = vmatpush1.msra.mxu0 0.0
        %831 = vmatprep.subr.mxu0 0.0
        %832 = vmatpush1.msra.mxu0 0.0
        %833 = vmatprep.subr.mxu0 0.0
        %834 = vmatpush1.msra.mxu0 0.0
        %835 = vmatprep.subr.mxu0 0.0
        %836 = vmatpush1.msra.mxu0 0.0
        %837 = vmatprep.subr.mxu0 0.0
        %838 = vmatpush1.msra.mxu0 0.0
        %839 = vmatprep.subr.mxu0 0.0
        %840 = vmatpush1.msra.mxu0 0.0
        %841 = vmatprep.subr.mxu0 0.0
        %842 = vmatpush1.msra.mxu0 0.0
        %843 = vmatprep.subr.mxu0 0.0
        %844 = vmatpush1.msra.mxu0 0.0
        %845 = vmatprep.subr.mxu0 0.0
        %846 = vmatpush1.msra.mxu0 0.0
        %847 = vmatprep.subr.mxu0 0.0
        %848 = vmatpush1.msra.mxu0 0.0
        %849 = vmatprep.mubr.f32.mxu0 0.0
        %850 = vmatmul.mubr.f32.gmra.mrb[0].mxu0 %v651
        %v851 = vpop.f32.mrb[0].mxu0
        %v852 = vadd.f32 %v777, %v851
        %v853 = vpop.f32.mrb[0].mxu0
        %854 = vmatprep.mubr.f32.mxu0 0.0
        %855 = vmatmul.mubr.f32.gmra.mrb[0].mxu0 %v654
        %v856 = vpop.f32.mrb[0].mxu0
        %v857 = vadd.f32 %v782, %v856
        %v858 = vpop.f32.mrb[0].mxu0
        %859 = vdwg.mxu0
        %860 = vst [vmem:[%s329] sm:$0xff] %v852
        %861 = vst [vmem:[%s329 + $0x8] sm:$0xff] %v857
        %s862 = sand.u32 %s185, 1
        %s863 = sand.u32 %s185, 1
        %s864 = smul.addr %s863, 16
        %s865 = scalar_lea.vmem [#allocation8], %s864
        // Predicated region
        $region65: #{generator_forward.1} parent=47 // pred_check
          %p866 = pneg %p195
        $region66: #{generator_forward.1} parent=47 // pred_check_branch
          %868 = sbr.rel (%p866) target = $region68
        $region67: #{generator_forward.1} parent=47 // pred_region
          %s869 = smul.addr %s20, 8
          %s870 = scalar_lea.vmem %s7, %s869
          // Predicated region
          $region69: #{generator_forward.1} parent=67 // pred_check
            _
          $region70: #{generator_forward.1} parent=67 // pred_check_branch
            %872 = sbr.rel (0) target = $region72
          $region71: #{generator_forward.1} parent=67 // pred_region
            // Predicated region
            $region73: #{generator_forward.1} parent=71 // pred_check
              _
            $region74: #{generator_forward.1} parent=71 // pred_check_branch
              %874 = sbr.rel (0) target = $region76
            $region75: #{generator_forward.1} parent=71 // pred_region
              // Predicated region
              $region88: #{generator_forward.1} parent=75 // pred_check
                _
              $region89: #{generator_forward.1} parent=75 // pred_check_branch
                %891 = sbr.rel (0) target = $region91
              $region90: #{generator_forward.1} parent=75 // pred_region
                loop: start=0, step=1, limit=1
                $region92: #{generator_forward.1} parent=90 // loop_pre_header
                  _
                $region93: #{generator_forward.1} parent=90 // loop_header
                  %s893 = sphi 0, %s897
                  %p894 = scmp.ge.s32.totalorder %s893, 1
                  %s898 = sphi %s865, %s865
                  %s899 = sphi %s870, %s870
                $region94: #{generator_forward.1} parent=90 // loop_header_branch
                  %896 = sbr.rel (%p894) target = $region98
                $region95: #{generator_forward.1} parent=90 // loop_body
                  %v900 = vld [vmem:[%s898] sm:$0xff]
                  %901 = vst [vmem:[%s899] sm:$0xff] %v900
                  %v902 = vld [vmem:[%s898 + $0x8] sm:$0xff]
                  %903 = vst [vmem:[%s899 + $0x10] sm:$0xff] %v902
                $region96: #{generator_forward.1} parent=90 // loop_footer
                  %s897 = sadd.s32 1, %s893
                $region97: #{generator_forward.1} parent=90 // loop_footer_branch
                  %892 = sbr.rel target = $region93
                $region98: #{generator_forward.1} parent=90 // loop_exit
                  _
              $region91: #{generator_forward.1} parent=75 // pred_fallthru
                _
              // Predicated region
              $region99: #{generator_forward.1} parent=75 // pred_check
                _
              $region100: #{generator_forward.1} parent=75 // pred_check_branch
                %905 = sbr.rel target = $region102
              $region101: #{generator_forward.1} parent=75 // pred_region
                _
              $region102: #{generator_forward.1} parent=75 // pred_fallthru
                _
            $region76: #{generator_forward.1} parent=71 // pred_fallthru
              _
            // Predicated region
            $region77: #{generator_forward.1} parent=71 // pred_check
              _
            $region78: #{generator_forward.1} parent=71 // pred_check_branch
              %876 = sbr.rel target = $region80
            $region79: #{generator_forward.1} parent=71 // pred_region
              loop: start=0, step=1, limit=1
              $region81: #{generator_forward.1} parent=79 // loop_pre_header
                _
              $region82: #{generator_forward.1} parent=79 // loop_header
                %s879 = sphi 0, %s883
                %p880 = scmp.ge.s32.totalorder %s879, 1
                %s884 = sphi %s865, %s865
                %s885 = sphi %s870, %s870
              $region83: #{generator_forward.1} parent=79 // loop_header_branch
                %882 = sbr.rel (%p880) target = $region87
              $region84: #{generator_forward.1} parent=79 // loop_body
                %v886 = vld [vmem:[%s884] sm:$0xff]
                %887 = vst [vmem:[%s885] sm:$0xff] %v886
                %v888 = vld [vmem:[%s884 + $0x8] sm:$0xff]
                %889 = vst [vmem:[%s885 + $0x10] sm:$0xff] %v888
              $region85: #{generator_forward.1} parent=79 // loop_footer
                %s883 = sadd.s32 1, %s879
              $region86: #{generator_forward.1} parent=79 // loop_footer_branch
                %878 = sbr.rel target = $region82
              $region87: #{generator_forward.1} parent=79 // loop_exit
                _
            $region80: #{generator_forward.1} parent=71 // pred_fallthru
              _
          $region72: #{generator_forward.1} parent=67 // pred_fallthru
            _
          %906 = vnop
        $region68: #{generator_forward.1} parent=47 // pred_fallthru
          _
      $region48: #{generator_forward.1} parent=5 // pred_fallthru
        _
      %p907 = scmp.le.s32.totalorder 2, %s15
      // Predicated region
      $region103: #{generator_forward.1} parent=5 // pred_check
        %p908 = pneg %p907
      $region104: #{generator_forward.1} parent=5 // pred_check_branch
        %910 = sbr.rel (%p908) target = $region106
      $region105: #{generator_forward.1} parent=5 // pred_region
        %s911 = ssub.s32 %s15, 2
        // Predicated region
        $region107: #{generator_forward.1} parent=105 // pred_check
          %p912 = pneg %p201
        $region108: #{generator_forward.1} parent=105 // pred_check_branch
          %914 = sbr.rel (%p912) target = $region110
        $region109: #{generator_forward.1} parent=105 // pred_region
          %s915 = sand.u32 %s186, 1
          %s916 = sand.u32 %s186, 1
          %s917 = smul.addr %s916, 16
          %s918 = scalar_lea.vmem [#allocation8], %s917
        $region110: #{generator_forward.1} parent=105 // pred_fallthru
          _
      $region106: #{generator_forward.1} parent=5 // pred_fallthru
        _
    $region6: #{generator_forward.1} parent=1 // loop_footer
      %s19 = sadd.s32 1, %s15
    $region7: #{generator_forward.1} parent=1 // loop_footer_branch
      %14 = sbr.rel target = $region3
    $region8: #{generator_forward.1} parent=1 // loop_exit
      _
    %919 = vsyncpa [#allocation4], 1
    %s920 = scalar_lea.sflag [#allocation4], 1
    %921 = vsyncpa %s920, 1
    %922 = vsyncpa [#allocation6], 1

</llo_original>
